<compile_context>
chip_gen: v5e
topology: v5e:2x2
jax: 0.10.0
libtpu: 0.0.40
codegen_flags: <defaults>
</compile_context>

<pallas_src>
import functools

import jax
import jax.numpy as jnp
import numpy as np
from jax.experimental import pallas as pl
from jax.experimental.pallas import tpu as pltpu


def _round_up(x, m):
    return (x + m - 1) // m * m


def _tree_lstm_kernel(hl_ref, hr_ref, cl_ref, cr_ref, wl_ref, wr_ref, b_ref,
                      h_out_ref, c_out_ref, *, hp, matmul_dtype):
    # Matmul operands in bf16 (f32 accumulation on the MXU); everything else f32.
    hl = hl_ref[...].astype(matmul_dtype)      # (TM, H)
    hr = hr_ref[...].astype(matmul_dtype)      # (TM, H)

    v = jnp.dot(hl, wl_ref[...], preferred_element_type=jnp.float32)
    v = v + jnp.dot(hr, wr_ref[...], preferred_element_type=jnp.float32)
    v = v + b_ref[...]                         # (TM, 5*Hp), f32

    # Gate slices are lane-tile aligned because hp % 128 == 0.
    i_g = v[:, 0 * hp:1 * hp]
    fl_g = v[:, 1 * hp:2 * hp]
    fr_g = v[:, 2 * hp:3 * hp]
    u_g = v[:, 3 * hp:4 * hp]
    o_g = v[:, 4 * hp:5 * hp]

    cl = cl_ref[...]                           # (TM, Hp) f32
    cr = cr_ref[...]

    c = (cl * jax.nn.sigmoid(fl_g + 1.0)
         + cr * jax.nn.sigmoid(fr_g + 1.0)
         + jnp.tanh(u_g) * jax.nn.sigmoid(i_g))
    h = jax.nn.sigmoid(o_g) * jnp.tanh(c)

    h_out_ref[...] = h.astype(h_out_ref.dtype)
    c_out_ref[...] = c.astype(c_out_ref.dtype)


def binary_tree_lstm_layer(l, r, w, b, *, tile_m=256,
                           matmul_dtype=jnp.bfloat16):
    """Pallas implementation of BinaryTreeLSTMLayer.forward.

    Args:
      l: (hl, cl) tuple, each (B, L, H) float32.
      r: (hr, cr) tuple, each (B, L, H) float32.
      w: comp_linear weight in (in, out) = (2H, 5H) layout, float32.
         (A PyTorch nn.Linear weight of shape (5H, 2H) should be transposed.)
      b: comp_linear bias, (5H,) float32.
    Returns:
      (h, c), each (B, L, H) float32.
    """
    hl, cl = l
    hr, cr = r
    B, L, H = hl.shape
    M = B * L

    Hp = _round_up(H, 128)                    # lane-dense hidden axis
    tm = min(tile_m, _round_up(M, 16))        # clamp tile for tiny inputs
    M_pad = _round_up(M, tm)

    def flat_pad(x, last_pad):
        x2 = x.reshape(M, H)
        return jnp.pad(x2, ((0, M_pad - M), (0, last_pad)))

    hl2 = flat_pad(hl, 0)                     # (M_pad, H)  f32 (cast in-kernel)
    hr2 = flat_pad(hr, 0)
    cl2 = flat_pad(cl, Hp - H)                # (M_pad, Hp) f32
    cr2 = flat_pad(cr, Hp - H)

    # Pre-split the weight into left/right halves and pad each gate's columns
    # to Hp so every gate lands on its own 128-lane-aligned block.
    w5 = w.reshape(2 * H, 5, H)
    w5p = jnp.pad(w5, ((0, 0), (0, 0), (0, Hp - H)))     # (2H, 5, Hp)
    wl = w5p[:H].reshape(H, 5 * Hp).astype(matmul_dtype)  # (H, 5*Hp) bf16
    wr = w5p[H:].reshape(H, 5 * Hp).astype(matmul_dtype)
    bp = jnp.pad(b.reshape(5, H), ((0, 0), (0, Hp - H))).reshape(1, 5 * Hp)

    kernel = functools.partial(_tree_lstm_kernel, hp=Hp,
                               matmul_dtype=matmul_dtype)

    in_h_spec = pl.BlockSpec((tm, H), lambda i: (i, 0))
    in_c_spec = pl.BlockSpec((tm, Hp), lambda i: (i, 0))
    w_spec = pl.BlockSpec((H, 5 * Hp), lambda i: (0, 0))     # VMEM-resident
    b_spec = pl.BlockSpec((1, 5 * Hp), lambda i: (0, 0))
    out_spec = pl.BlockSpec((tm, Hp), lambda i: (i, 0))

    h_out, c_out = pl.pallas_call(
        kernel,
        out_shape=(jax.ShapeDtypeStruct((M_pad, Hp), jnp.float32),
                   jax.ShapeDtypeStruct((M_pad, Hp), jnp.float32)),
        grid_spec=pltpu.PrefetchScalarGridSpec(
            num_scalar_prefetch=0,
            grid=(M_pad // tm,),
            in_specs=[in_h_spec, in_h_spec, in_c_spec, in_c_spec,
                      w_spec, w_spec, b_spec],
            out_specs=[out_spec, out_spec],
        ),
        compiler_params=pltpu.CompilerParams(
            dimension_semantics=("parallel",),
            vmem_limit_bytes=64 * 1024 * 1024),
    )(hl2, hr2, cl2, cr2, wl, wr, bp)

    h = h_out[:M, :H].reshape(B, L, H)
    c = c_out[:M, :H].reshape(B, L, H)
    return h, c


def _reference(l, r, w, b, matmul_dtype=None):
    """Pure-JAX reference. If matmul_dtype is set, the matmul operands are
    quantized the same way the kernel does (f32 accumulation)."""
    hl, cl = l
    hr, cr = r
    hlr = jnp.concatenate([hl, hr], axis=-1)
    wm = w
    if matmul_dtype is not None:
        hlr = hlr.astype(matmul_dtype)
        wm = wm.astype(matmul_dtype)
    v = jnp.einsum("blk,kn->bln", hlr, wm,
                   preferred_element_type=jnp.float32) + b
    i_g, fl_g, fr_g, u_g, o_g = jnp.split(v, 5, axis=-1)
    c = (cl * jax.nn.sigmoid(fl_g + 1.0)
         + cr * jax.nn.sigmoid(fr_g + 1.0)
         + jnp.tanh(u_g) * jax.nn.sigmoid(i_g))
    h = jax.nn.sigmoid(o_g) * jnp.tanh(c)
    return h, c


def _run_case(B, L, H, key):
    k_hl, k_cl, k_hr, k_cr, k_w, k_b = jax.random.split(key, 6)
    hl = jax.random.normal(k_hl, (B, L, H), dtype=jnp.float32)
    cl = jax.random.normal(k_cl, (B, L, H), dtype=jnp.float32)
    hr = jax.random.normal(k_hr, (B, L, H), dtype=jnp.float32)
    cr = jax.random.normal(k_cr, (B, L, H), dtype=jnp.float32)

    bound = 1.0 / np.sqrt(2 * H)
    w = jax.random.uniform(k_w, (2 * H, 5 * H), dtype=jnp.float32,
                           minval=-bound, maxval=bound)
    b = jax.random.uniform(k_b, (5 * H,), dtype=jnp.float32,
                           minval=-bound, maxval=bound)

    h_out, c_out = binary_tree_lstm_layer((hl, cl), (hr, cr), w, b)
    jax.block_until_ready((h_out, c_out))

    # Matched-precision reference (bf16 matmul operands): tight wiring check.
    h_rq, c_rq = _reference((hl, cl), (hr, cr), w, b,
                            matmul_dtype=jnp.bfloat16)
    np.testing.assert_allclose(np.asarray(h_out), np.asarray(h_rq),
                               rtol=1e-3, atol=1e-3)
    np.testing.assert_allclose(np.asarray(c_out), np.asarray(c_rq),
                               rtol=1e-3, atol=1e-3)

    # Full f32 reference: bounds the bf16-operand quantization error.
    h_rf, c_rf = _reference((hl, cl), (hr, cr), w, b)
    np.testing.assert_allclose(np.asarray(h_out), np.asarray(h_rf),
                               rtol=1e-1, atol=1e-1)
    np.testing.assert_allclose(np.asarray(c_out), np.asarray(c_rf),
                               rtol=1e-1, atol=1e-1)


if __name__ == "__main__":
    key = jax.random.PRNGKey(0)
    k1, k2 = jax.random.split(key)
    # Spec-like small shape (B=2, L=8, H=32): single row tile, Hp padded to 128.
    _run_case(2, 8, 32, k1)
    # Larger shape exercising M padding, Hp padding and a 2-step parallel grid.
    _run_case(4, 80, 96, k2)
    print("KERNEL_OK")
</pallas_src>

<mosaic_0001>
module attributes {stable_mosaic.version = 11 : i64} {
  func.func @_tree_lstm_kernel(%arg0: i32, %arg1: memref<16x32xf32, #tpu.memory_space<vmem>>, %arg2: memref<16x32xf32, #tpu.memory_space<vmem>>, %arg3: memref<16x128xf32, #tpu.memory_space<vmem>>, %arg4: memref<16x128xf32, #tpu.memory_space<vmem>>, %arg5: memref<32x640xbf16, #tpu.memory_space<vmem>>, %arg6: memref<32x640xbf16, #tpu.memory_space<vmem>>, %arg7: memref<1x640xf32, #tpu.memory_space<vmem>>, %arg8: memref<16x128xf32, #tpu.memory_space<vmem>>, %arg9: memref<16x128xf32, #tpu.memory_space<vmem>>) attributes {dimension_semantics = [#tpu.dimension_semantics<parallel>], iteration_bounds = array<i64: 1>, scalar_prefetch = 0 : i64, scratch_operands = 0 : i64, tpu.core_type = #tpu.core_type<tc>, window_params = [{transform_indices = @transform_0, window_bounds = array<i64: 16, 32>}, {transform_indices = @transform_1, window_bounds = array<i64: 16, 32>}, {transform_indices = @transform_2, window_bounds = array<i64: 16, 128>}, {transform_indices = @transform_3, window_bounds = array<i64: 16, 128>}, {pipeline_mode = #tpu.pipeline_mode<synchronous>, transform_indices = @transform_4, window_bounds = array<i64: 32, 640>}, {pipeline_mode = #tpu.pipeline_mode<synchronous>, transform_indices = @transform_5, window_bounds = array<i64: 32, 640>}, {pipeline_mode = #tpu.pipeline_mode<synchronous>, transform_indices = @transform_6, window_bounds = array<i64: 1, 640>}, {transform_indices = @transform_7, window_bounds = array<i64: 16, 128>}, {transform_indices = @transform_8, window_bounds = array<i64: 16, 128>}]} {
    %c0 = arith.constant 0 : index
    %c0_0 = arith.constant 0 : index
    %0 = vector.load %arg1[%c0, %c0_0] : memref<16x32xf32, #tpu.memory_space<vmem>>, vector<16x32xf32>
    %1 = arith.truncf %0 : vector<16x32xf32> to vector<16x32xbf16>
    %c0_1 = arith.constant 0 : index
    %c0_2 = arith.constant 0 : index
    %2 = vector.load %arg2[%c0_1, %c0_2] : memref<16x32xf32, #tpu.memory_space<vmem>>, vector<16x32xf32>
    %3 = arith.truncf %2 : vector<16x32xf32> to vector<16x32xbf16>
    %c0_3 = arith.constant 0 : index
    %c0_4 = arith.constant 0 : index
    %4 = vector.load %arg5[%c0_3, %c0_4] : memref<32x640xbf16, #tpu.memory_space<vmem>>, vector<32x640xbf16>
    %cst = arith.constant dense<0.000000e+00> : vector<16x640xf32>
    %5 = tpu.matmul %1, %4, %cst {dimension_numbers = #tpu.dot_dimension_numbers<[1], [0], [0], [1], [0, 0, 1, 1], [], []>} : vector<16x32xbf16>, vector<32x640xbf16>, vector<16x640xf32> -> vector<16x640xf32>
    %c0_5 = arith.constant 0 : index
    %c0_6 = arith.constant 0 : index
    %6 = vector.load %arg6[%c0_5, %c0_6] : memref<32x640xbf16, #tpu.memory_space<vmem>>, vector<32x640xbf16>
    %cst_7 = arith.constant dense<0.000000e+00> : vector<16x640xf32>
    %7 = tpu.matmul %3, %6, %cst_7 {dimension_numbers = #tpu.dot_dimension_numbers<[1], [0], [0], [1], [0, 0, 1, 1], [], []>} : vector<16x32xbf16>, vector<32x640xbf16>, vector<16x640xf32> -> vector<16x640xf32>
    %8 = arith.addf %5, %7 : vector<16x640xf32>
    %c0_8 = arith.constant 0 : index
    %c0_9 = arith.constant 0 : index
    %9 = vector.load %arg7[%c0_8, %c0_9] : memref<1x640xf32, #tpu.memory_space<vmem>>, vector<1x640xf32>
    %10 = vector.broadcast %9 : vector<1x640xf32> to vector<16x640xf32>
    %11 = arith.addf %8, %10 : vector<16x640xf32>
    %12 = vector.extract_strided_slice %11 {offsets = [0, 0], sizes = [16, 128], strides = [1, 1]} : vector<16x640xf32> to vector<16x128xf32>
    %13 = vector.extract_strided_slice %11 {offsets = [0, 128], sizes = [16, 128], strides = [1, 1]} : vector<16x640xf32> to vector<16x128xf32>
    %14 = vector.extract_strided_slice %11 {offsets = [0, 256], sizes = [16, 128], strides = [1, 1]} : vector<16x640xf32> to vector<16x128xf32>
    %15 = vector.extract_strided_slice %11 {offsets = [0, 384], sizes = [16, 128], strides = [1, 1]} : vector<16x640xf32> to vector<16x128xf32>
    %16 = vector.extract_strided_slice %11 {offsets = [0, 512], sizes = [16, 128], strides = [1, 1]} : vector<16x640xf32> to vector<16x128xf32>
    %c0_10 = arith.constant 0 : index
    %c0_11 = arith.constant 0 : index
    %17 = vector.load %arg3[%c0_10, %c0_11] : memref<16x128xf32, #tpu.memory_space<vmem>>, vector<16x128xf32>
    %c0_12 = arith.constant 0 : index
    %c0_13 = arith.constant 0 : index
    %18 = vector.load %arg4[%c0_12, %c0_13] : memref<16x128xf32, #tpu.memory_space<vmem>>, vector<16x128xf32>
    %cst_14 = arith.constant 1.000000e+00 : f32
    %19 = vector.broadcast %cst_14 : f32 to vector<16x128xf32>
    %20 = arith.addf %13, %19 : vector<16x128xf32>
    %21 = arith.negf %20 : vector<16x128xf32>
    %22 = math.exp %21 : vector<16x128xf32>
    %cst_15 = arith.constant 1.000000e+00 : f32
    %23 = vector.broadcast %cst_15 : f32 to vector<16x128xf32>
    %24 = arith.addf %23, %22 : vector<16x128xf32>
    %25 = arith.divf %23, %24 : vector<16x128xf32>
    %26 = arith.mulf %17, %25 : vector<16x128xf32>
    %cst_16 = arith.constant 1.000000e+00 : f32
    %27 = vector.broadcast %cst_16 : f32 to vector<16x128xf32>
    %28 = arith.addf %14, %27 : vector<16x128xf32>
    %29 = arith.negf %28 : vector<16x128xf32>
    %30 = math.exp %29 : vector<16x128xf32>
    %cst_17 = arith.constant 1.000000e+00 : f32
    %31 = vector.broadcast %cst_17 : f32 to vector<16x128xf32>
    %32 = arith.addf %31, %30 : vector<16x128xf32>
    %33 = arith.divf %31, %32 : vector<16x128xf32>
    %34 = arith.mulf %18, %33 : vector<16x128xf32>
    %35 = arith.addf %26, %34 : vector<16x128xf32>
    %36 = math.tanh %15 : vector<16x128xf32>
    %37 = arith.negf %12 : vector<16x128xf32>
    %38 = math.exp %37 : vector<16x128xf32>
    %cst_18 = arith.constant 1.000000e+00 : f32
    %39 = vector.broadcast %cst_18 : f32 to vector<16x128xf32>
    %40 = arith.addf %39, %38 : vector<16x128xf32>
    %41 = arith.divf %39, %40 : vector<16x128xf32>
    %42 = arith.mulf %36, %41 : vector<16x128xf32>
    %43 = arith.addf %35, %42 : vector<16x128xf32>
    %44 = arith.negf %16 : vector<16x128xf32>
    %45 = math.exp %44 : vector<16x128xf32>
    %cst_19 = arith.constant 1.000000e+00 : f32
    %46 = vector.broadcast %cst_19 : f32 to vector<16x128xf32>
    %47 = arith.addf %46, %45 : vector<16x128xf32>
    %48 = arith.divf %46, %47 : vector<16x128xf32>
    %49 = math.tanh %43 : vector<16x128xf32>
    %50 = arith.mulf %48, %49 : vector<16x128xf32>
    %c0_20 = arith.constant 0 : index
    %c0_21 = arith.constant 0 : index
    %51 = vector.load %arg8[%c0_20, %c0_21] : memref<16x128xf32, #tpu.memory_space<vmem>>, vector<16x128xf32>
    tpu.vector_store %arg8[%c0_20, %c0_21], %50 {strides = array<i32>} : memref<16x128xf32, #tpu.memory_space<vmem>>, vector<16x128xf32>,
    %c0_22 = arith.constant 0 : index
    %c0_23 = arith.constant 0 : index
    %52 = vector.load %arg9[%c0_22, %c0_23] : memref<16x128xf32, #tpu.memory_space<vmem>>, vector<16x128xf32>
    tpu.vector_store %arg9[%c0_22, %c0_23], %43 {strides = array<i32>} : memref<16x128xf32, #tpu.memory_space<vmem>>, vector<16x128xf32>,
    return
  }
  func.func @transform_0(%arg0: i32) -> (i32, i32) {
    %c0_i32 = arith.constant 0 : i32
    %c0_i32_0 = arith.constant 0 : i32
    return %arg0, %c0_i32 : i32, i32
  }
  func.func @transform_1(%arg0: i32) -> (i32, i32) {
    %c0_i32 = arith.constant 0 : i32
    %c0_i32_0 = arith.constant 0 : i32
    return %arg0, %c0_i32 : i32, i32
  }
  func.func @transform_2(%arg0: i32) -> (i32, i32) {
    %c0_i32 = arith.constant 0 : i32
    %c0_i32_0 = arith.constant 0 : i32
    return %arg0, %c0_i32 : i32, i32
  }
  func.func @transform_3(%arg0: i32) -> (i32, i32) {
    %c0_i32 = arith.constant 0 : i32
    %c0_i32_0 = arith.constant 0 : i32
    return %arg0, %c0_i32 : i32, i32
  }
  func.func @transform_4(%arg0: i32) -> (i32, i32) {
    %c0_i32 = arith.constant 0 : i32
    %c0_i32_0 = arith.constant 0 : i32
    %c0_i32_1 = arith.constant 0 : i32
    return %c0_i32, %c0_i32_0 : i32, i32
  }
  func.func @transform_5(%arg0: i32) -> (i32, i32) {
    %c0_i32 = arith.constant 0 : i32
    %c0_i32_0 = arith.constant 0 : i32
    %c0_i32_1 = arith.constant 0 : i32
    return %c0_i32, %c0_i32_0 : i32, i32
  }
  func.func @transform_6(%arg0: i32) -> (i32, i32) {
    %c0_i32 = arith.constant 0 : i32
    %c0_i32_0 = arith.constant 0 : i32
    %c0_i32_1 = arith.constant 0 : i32
    return %c0_i32, %c0_i32_0 : i32, i32
  }
  func.func @transform_7(%arg0: i32) -> (i32, i32) {
    %c0_i32 = arith.constant 0 : i32
    %c0_i32_0 = arith.constant 0 : i32
    return %arg0, %c0_i32 : i32, i32
  }
  func.func @transform_8(%arg0: i32) -> (i32, i32) {
    %c0_i32 = arith.constant 0 : i32
    %c0_i32_0 = arith.constant 0 : i32
    return %arg0, %c0_i32 : i32, i32
  }
}

</mosaic_0001>

<llo_original>
// kernel: tpu_custom_call.1
$region0: #{tpu_custom_call.1}
  #allocation0 [shape = 'u32[]', space=smem, size = 0x4, offset = 0x4, fixed_abs, tag = 'smem constant byte address 0x4 - core index']
  #allocation1 [shape = 'u32[72,128]{1,0:T(1,128)}', space=vmem, size = 0x9000, scoped, tag = 'internal scratch']
  %s0 = inlined_call_operand.hbm [shape: f32[16,32], index: 0, kind: input, shape index: {}]
  %s1 = inlined_call_operand.hbm [shape: f32[16,32], index: 1, kind: input, shape index: {}]
  %s2 = inlined_call_operand.hbm [shape: f32[16,128], index: 2, kind: input, shape index: {}]
  %s3 = inlined_call_operand.hbm [shape: f32[16,128], index: 3, kind: input, shape index: {}]
  %s4 = inlined_call_operand.hbm [shape: bf16[32,640], index: 4, kind: input, shape index: {}]
  %s5 = inlined_call_operand.hbm [shape: bf16[32,640], index: 5, kind: input, shape index: {}]
  %s6 = inlined_call_operand.vmem [shape: f32[1,640], index: 6, kind: input, shape index: {}]
  %s7 = inlined_call_operand.hbm [shape: f32[16,128], index: 7, kind: output, shape index: {0}]
  %s8 = inlined_call_operand.hbm [shape: f32[16,128], index: 8, kind: output, shape index: {1}]
  %9 = xla_tuple %s7, %s8
  %s10 = sld [smem:[#allocation0]]
  $region70: #{tpu_custom_call.1} parent=0
    _
  %s12 = ssub.s32 1, %s10
  %s13 = scalar_select 0, %s12, %s10
  $region1: #{tpu_custom_call.1} parent=0
    #allocation2 [shape = 'u8[8192]{0}', space=vmem, size = 0x2000, scoped, tag = 'input window, operand 0, single buffered']
    #allocation3 [shape = 's32[1]{0}', space=sflag, size = 0x4, scoped, tag = 'scoped memory for tpu_custom_call.1']
    #allocation4 [shape = 's32[1]{0}', space=sflag, size = 0x4, scoped, tag = 'scoped memory for tpu_custom_call.1']
    #allocation5 [shape = 'u8[8192]{0}', space=vmem, size = 0x2000, scoped, tag = 'input window, operand 1, single buffered']
    #allocation6 [shape = 's32[1]{0}', space=sflag, size = 0x4, scoped, tag = 'scoped memory for tpu_custom_call.1']
    #allocation7 [shape = 'u8[8192]{0}', space=vmem, size = 0x2000, scoped, tag = 'input window, operand 2, single buffered']
    #allocation8 [shape = 'u8[8192]{0}', space=vmem, size = 0x2000, scoped, tag = 'input window, operand 3, single buffered']
    #allocation9 [shape = 's32[1]{0}', space=sflag, size = 0x4, scoped, tag = 'scoped memory for tpu_custom_call.1']
    #allocation10 [shape = 'u8[40960]{0}', space=vmem, size = 0xa000, scoped, tag = 'input window, operand 4, single buffered']
    #allocation11 [shape = 'u8[40960]{0}', space=vmem, size = 0xa000, scoped, tag = 'input window, operand 5, single buffered']
    #allocation12 [shape = 's32[1]{0}', space=sflag, size = 0x4, scoped, tag = 'scoped memory for tpu_custom_call.1']
    #allocation13 [shape = 'u8[8192]{0}', space=vmem, size = 0x2000, scoped, tag = 'output window, operand 0, single buffered']
    #allocation14 [shape = 'u8[8192]{0}', space=vmem, size = 0x2000, scoped, tag = 'output window, operand 1, single buffered']
    #allocation15 [shape = 's32[1]{0}', space=sflag, size = 0x4, scoped, tag = 'scoped memory for tpu_custom_call.1']
    %14 = vsyncpa [#allocation3], 0
    %15 = vsyncpa [#allocation6], 0
    %16 = vsyncpa [#allocation9], 0
    %17 = vsyncpa [#allocation12], 0
    %18 = vsyncpa [#allocation4], 0
    %19 = vsyncpa [#allocation15], 0
    // Predicated region
    $region2: #{tpu_custom_call.1} parent=1 // pred_check
      _
    $region3: #{tpu_custom_call.1} parent=1 // pred_check_branch
      %21 = sbr.rel (0) target = $region5
    $region4: #{tpu_custom_call.1} parent=1 // pred_region
      %23 = vsyncadd [#allocation3], 0
      %s24 = sshll.u32 %s0, 4
      %s25 = int_to_ptr.hbm [resolvable:$true] %s24
      %s26 = sshll.u32 [#allocation2], 4
      %s27 = int_to_ptr.vmem [resolvable:$true] %s26
      %32 = dma.hbm_to_vmem [thread:$0]  %s25, 256, %s27, [#allocation3], 128, 128, 8
    $region5: #{tpu_custom_call.1} parent=1 // pred_fallthru
      _
    // Predicated region
    $region6: #{tpu_custom_call.1} parent=1 // pred_check
      _
    $region7: #{tpu_custom_call.1} parent=1 // pred_check_branch
      %34 = sbr.rel (0) target = $region9
    $region8: #{tpu_custom_call.1} parent=1 // pred_region
      %36 = vsyncadd [#allocation6], 0
      %s37 = sshll.u32 %s1, 4
      %s38 = int_to_ptr.hbm [resolvable:$true] %s37
      %s39 = sshll.u32 [#allocation5], 4
      %s40 = int_to_ptr.vmem [resolvable:$true] %s39
      %45 = dma.hbm_to_vmem [thread:$0]  %s38, 256, %s40, [#allocation6], 128, 128, 8
    $region9: #{tpu_custom_call.1} parent=1 // pred_fallthru
      _
    // Predicated region
    $region10: #{tpu_custom_call.1} parent=1 // pred_check
      _
    $region11: #{tpu_custom_call.1} parent=1 // pred_check_branch
      %47 = sbr.rel (0) target = $region13
    $region12: #{tpu_custom_call.1} parent=1 // pred_region
      %49 = vsyncadd [#allocation6], 0
      %s50 = sshll.u32 %s2, 4
      %s51 = int_to_ptr.hbm [resolvable:$true] %s50
      %s52 = sshll.u32 [#allocation7], 4
      %s53 = int_to_ptr.vmem [resolvable:$true] %s52
      %58 = dma.hbm_to_vmem [thread:$0]  %s51, 256, %s53, [#allocation6], 128, 128, 8
    $region13: #{tpu_custom_call.1} parent=1 // pred_fallthru
      _
    // Predicated region
    $region14: #{tpu_custom_call.1} parent=1 // pred_check
      _
    $region15: #{tpu_custom_call.1} parent=1 // pred_check_branch
      %60 = sbr.rel (0) target = $region17
    $region16: #{tpu_custom_call.1} parent=1 // pred_region
      %62 = vsyncadd [#allocation9], 0
      %s63 = sshll.u32 %s3, 4
      %s64 = int_to_ptr.hbm [resolvable:$true] %s63
      %s65 = sshll.u32 [#allocation8], 4
      %s66 = int_to_ptr.vmem [resolvable:$true] %s65
      %71 = dma.hbm_to_vmem [thread:$0]  %s64, 256, %s66, [#allocation9], 128, 128, 8
    $region17: #{tpu_custom_call.1} parent=1 // pred_fallthru
      _
    // Predicated region
    $region18: #{tpu_custom_call.1} parent=1 // pred_check
      _
    $region19: #{tpu_custom_call.1} parent=1 // pred_check_branch
      %73 = sbr.rel (0) target = $region21
    $region20: #{tpu_custom_call.1} parent=1 // pred_region
      %75 = vsyncadd [#allocation9], 0
      %s76 = sshll.u32 %s4, 4
      %s77 = int_to_ptr.hbm [resolvable:$true] %s76
      %s78 = sshll.u32 [#allocation10], 4
      %s79 = int_to_ptr.vmem [resolvable:$true] %s78
      %84 = dma.hbm_to_vmem [thread:$0]  %s77, 1280, %s79, [#allocation9], 320, 320, 20
    $region21: #{tpu_custom_call.1} parent=1 // pred_fallthru
      _
    // Predicated region
    $region22: #{tpu_custom_call.1} parent=1 // pred_check
      _
    $region23: #{tpu_custom_call.1} parent=1 // pred_check_branch
      %86 = sbr.rel (0) target = $region25
    $region24: #{tpu_custom_call.1} parent=1 // pred_region
      %88 = vsyncadd [#allocation12], 0
      %s89 = sshll.u32 %s5, 4
      %s90 = int_to_ptr.hbm [resolvable:$true] %s89
      %s91 = sshll.u32 [#allocation11], 4
      %s92 = int_to_ptr.vmem [resolvable:$true] %s91
      %97 = dma.hbm_to_vmem [thread:$0]  %s90, 1280, %s92, [#allocation12], 320, 320, 20
    $region25: #{tpu_custom_call.1} parent=1 // pred_fallthru
      _
    // Predicated region
    $region26: #{tpu_custom_call.1} parent=1 // pred_check
      _
    $region27: #{tpu_custom_call.1} parent=1 // pred_check_branch
      %99 = sbr.rel (0) target = $region29
    $region28: #{tpu_custom_call.1} parent=1 // pred_region
      _
    $region29: #{tpu_custom_call.1} parent=1 // pred_fallthru
      _
    // Predicated region
    $region30: #{tpu_custom_call.1} parent=1 // pred_check
      _
    $region31: #{tpu_custom_call.1} parent=1 // pred_check_branch
      %101 = sbr.rel (0) target = $region33
    $region32: #{tpu_custom_call.1} parent=1 // pred_region
      %103 = dma.done [#allocation3], 256
    $region33: #{tpu_custom_call.1} parent=1 // pred_fallthru
      _
    // Predicated region
    $region34: #{tpu_custom_call.1} parent=1 // pred_check
      _
    $region35: #{tpu_custom_call.1} parent=1 // pred_check_branch
      %105 = sbr.rel (0) target = $region37
    $region36: #{tpu_custom_call.1} parent=1 // pred_region
      %107 = dma.done [#allocation6], 256
    $region37: #{tpu_custom_call.1} parent=1 // pred_fallthru
      _
    // Predicated region
    $region38: #{tpu_custom_call.1} parent=1 // pred_check
      _
    $region39: #{tpu_custom_call.1} parent=1 // pred_check_branch
      %109 = sbr.rel (0) target = $region41
    $region40: #{tpu_custom_call.1} parent=1 // pred_region
      %111 = dma.done [#allocation6], 256
    $region41: #{tpu_custom_call.1} parent=1 // pred_fallthru
      _
    // Predicated region
    $region42: #{tpu_custom_call.1} parent=1 // pred_check
      _
    $region43: #{tpu_custom_call.1} parent=1 // pred_check_branch
      %113 = sbr.rel (0) target = $region45
    $region44: #{tpu_custom_call.1} parent=1 // pred_region
      %115 = dma.done [#allocation9], 256
    $region45: #{tpu_custom_call.1} parent=1 // pred_fallthru
      _
    // Predicated region
    $region46: #{tpu_custom_call.1} parent=1 // pred_check
      _
    $region47: #{tpu_custom_call.1} parent=1 // pred_check_branch
      %117 = sbr.rel (0) target = $region49
    $region48: #{tpu_custom_call.1} parent=1 // pred_region
      %119 = dma.done [#allocation9], 1280
    $region49: #{tpu_custom_call.1} parent=1 // pred_fallthru
      _
    // Predicated region
    $region50: #{tpu_custom_call.1} parent=1 // pred_check
      _
    $region51: #{tpu_custom_call.1} parent=1 // pred_check_branch
      %121 = sbr.rel (0) target = $region53
    $region52: #{tpu_custom_call.1} parent=1 // pred_region
      %123 = dma.done [#allocation12], 1280
    $region53: #{tpu_custom_call.1} parent=1 // pred_fallthru
      _
    %v125 = vld [vmem:[#allocation2] sm:$0xff]
    %v126 = vld [vmem:[#allocation2 + $0x8] sm:$0xff]
    %v127 = vpack.c.bf16 %v126, %v125
    %v128 = vld [vmem:[#allocation5] sm:$0xff]
    %v129 = vld [vmem:[#allocation5 + $0x8] sm:$0xff]
    %v130 = vpack.c.bf16 %v129, %v128
    %v131 = vld [vmem:[#allocation10] sm:$0xff]
    %v132 = vld [vmem:[#allocation10 + $0x8] sm:$0xff]
    %v133 = vld [vmem:[#allocation10 + $0x10] sm:$0xf]
    %v134 = vld [vmem:[#allocation10 + $0x14] sm:$0xff]
    %v135 = vld [vmem:[#allocation10 + $0x1c] sm:$0xff]
    %v136 = vld [vmem:[#allocation10 + $0x24] sm:$0xf]
    %v137 = vld [vmem:[#allocation10 + $0x28] sm:$0xff]
    %v138 = vld [vmem:[#allocation10 + $0x30] sm:$0xff]
    %v139 = vld [vmem:[#allocation10 + $0x38] sm:$0xf]
    %v140 = vld [vmem:[#allocation10 + $0x3c] sm:$0xff]
    %v141 = vld [vmem:[#allocation10 + $0x44] sm:$0xff]
    %v142 = vld [vmem:[#allocation10 + $0x4c] sm:$0xf]
    %v143 = vld [vmem:[#allocation11] sm:$0xff]
    %v144 = vld [vmem:[#allocation11 + $0x8] sm:$0xff]
    %v145 = vld [vmem:[#allocation11 + $0x10] sm:$0xf]
    %v146 = vld [vmem:[#allocation11 + $0x14] sm:$0xff]
    %v147 = vld [vmem:[#allocation11 + $0x1c] sm:$0xff]
    %v148 = vld [vmem:[#allocation11 + $0x24] sm:$0xf]
    %v149 = vld [vmem:[#allocation11 + $0x28] sm:$0xff]
    %v150 = vld [vmem:[#allocation11 + $0x30] sm:$0xff]
    %v151 = vld [vmem:[#allocation11 + $0x38] sm:$0xf]
    %v152 = vld [vmem:[#allocation11 + $0x3c] sm:$0xff]
    %v153 = vld [vmem:[#allocation11 + $0x44] sm:$0xff]
    %v154 = vld [vmem:[#allocation11 + $0x4c] sm:$0xf]
    %v167 = vunpack.c.l.b16 %v143
    %v168 = vunpack.c.h.b16 %v143
    %v169 = vunpack.c.l.b16 %v144
    %v170 = vunpack.c.h.b16 %v144
    %v171 = vunpack.c.l.b16 %v145
    %v172 = vunpack.c.l.b16 %v146
    %v173 = vunpack.c.h.b16 %v146
    %v174 = vunpack.c.l.b16 %v147
    %v175 = vunpack.c.h.b16 %v147
    %v176 = vunpack.c.l.b16 %v148
    %v177 = vunpack.c.l.b16 %v149
    %v178 = vunpack.c.h.b16 %v149
    %v179 = vunpack.c.l.b16 %v150
    %v180 = vunpack.c.h.b16 %v150
    %v181 = vunpack.c.l.b16 %v151
    %v182 = vunpack.c.l.b16 %v152
    %v183 = vunpack.c.h.b16 %v152
    %v184 = vunpack.c.l.b16 %v153
    %v185 = vunpack.c.h.b16 %v153
    %v186 = vunpack.c.l.b16 %v154
    %v187 = vpack.c.b16 %v172, %v167
    %v188 = vpack.c.b16 %v173, %v168
    %v189 = vpack.c.b16 %v174, %v169
    %v190 = vpack.c.b16 %v175, %v170
    %v191 = vpack.c.b16 %v176, %v171
    %v192 = vpack.c.b16 %v182, %v177
    %v193 = vpack.c.b16 %v183, %v178
    %v194 = vpack.c.b16 %v184, %v179
    %v195 = vpack.c.b16 %v185, %v180
    %v196 = vpack.c.b16 %v186, %v181
    %vm207 = vcmask 261120
    %v209 = vsel %vm207, %v130, 0
    %211 = vmatpush.bf16.msra.mxu0 0
    %212 = vmatpush.bf16.msra.mxu0 0
    %213 = vmatpush.bf16.msra.mxu0 0
    %214 = vmatpush.bf16.msra.mxu0 0
    %215 = vmatpush.bf16.msra.mxu0 0
    %216 = vmatpush.bf16.msra.mxu0 0
    %217 = vmatpush.bf16.msra.mxu0 %v192
    %218 = vmatpush.bf16.msra.mxu0 %v187
    %219 = vmatmul.bf16.gmra.mxu0 %v209
    %v220 = vpop.f32.mrf.mxu0
    %v221 = vadd.f32 0.0, %v220
    %v222 = vpop.f32.mrf.mxu0
    %v223 = vadd.f32 0.0, %v222
    %224 = vdwg.mxu0
    %225 = vmatpush.bf16.msra.mxu0 0
    %226 = vmatpush.bf16.msra.mxu0 0
    %227 = vmatpush.bf16.msra.mxu0 0
    %228 = vmatpush.bf16.msra.mxu0 0
    %229 = vmatpush.bf16.msra.mxu0 0
    %230 = vmatpush.bf16.msra.mxu0 0
    %231 = vmatpush.bf16.msra.mxu0 %v193
    %232 = vmatpush.bf16.msra.mxu0 %v188
    %233 = vmatmul.bf16.gmra.mxu0 %v209
    %v234 = vpop.f32.mrf.mxu0
    %v235 = vadd.f32 0.0, %v234
    %v236 = vpop.f32.mrf.mxu0
    %v237 = vadd.f32 0.0, %v236
    %238 = vdwg.mxu0
    %239 = vmatpush.bf16.msra.mxu0 0
    %240 = vmatpush.bf16.msra.mxu0 0
    %241 = vmatpush.bf16.msra.mxu0 0
    %242 = vmatpush.bf16.msra.mxu0 0
    %243 = vmatpush.bf16.msra.mxu0 0
    %244 = vmatpush.bf16.msra.mxu0 0
    %245 = vmatpush.bf16.msra.mxu0 %v194
    %246 = vmatpush.bf16.msra.mxu0 %v189
    %247 = vmatmul.bf16.gmra.mxu0 %v209
    %v248 = vpop.f32.mrf.mxu0
    %v249 = vadd.f32 0.0, %v248
    %v250 = vpop.f32.mrf.mxu0
    %v251 = vadd.f32 0.0, %v250
    %252 = vdwg.mxu0
    %253 = vmatpush.bf16.msra.mxu0 0
    %254 = vmatpush.bf16.msra.mxu0 0
    %255 = vmatpush.bf16.msra.mxu0 0
    %256 = vmatpush.bf16.msra.mxu0 0
    %257 = vmatpush.bf16.msra.mxu0 0
    %258 = vmatpush.bf16.msra.mxu0 0
    %259 = vmatpush.bf16.msra.mxu0 %v195
    %260 = vmatpush.bf16.msra.mxu0 %v190
    %261 = vmatmul.bf16.gmra.mxu0 %v209
    %v262 = vpop.f32.mrf.mxu0
    %v263 = vadd.f32 0.0, %v262
    %v264 = vpop.f32.mrf.mxu0
    %v265 = vadd.f32 0.0, %v264
    %266 = vdwg.mxu0
    %267 = vmatpush.bf16.msra.mxu0 0
    %268 = vmatpush.bf16.msra.mxu0 0
    %269 = vmatpush.bf16.msra.mxu0 0
    %270 = vmatpush.bf16.msra.mxu0 0
    %271 = vmatpush.bf16.msra.mxu0 0
    %272 = vmatpush.bf16.msra.mxu0 0
    %273 = vmatpush.bf16.msra.mxu0 %v196
    %274 = vmatpush.bf16.msra.mxu0 %v191
    %275 = vmatmul.bf16.gmra.mxu0 %v209
    %v276 = vpop.f32.mrf.mxu0
    %v277 = vadd.f32 0.0, %v276
    %v278 = vpop.f32.mrf.mxu0
    %v279 = vadd.f32 0.0, %v278
    %280 = vdwg.mxu0
    %v293 = vunpack.c.l.b16 %v131
    %v294 = vunpack.c.h.b16 %v131
    %v295 = vunpack.c.l.b16 %v132
    %v296 = vunpack.c.h.b16 %v132
    %v297 = vunpack.c.l.b16 %v133
    %v298 = vunpack.c.l.b16 %v134
    %v299 = vunpack.c.h.b16 %v134
    %v300 = vunpack.c.l.b16 %v135
    %v301 = vunpack.c.h.b16 %v135
    %v302 = vunpack.c.l.b16 %v136
    %v303 = vunpack.c.l.b16 %v137
    %v304 = vunpack.c.h.b16 %v137
    %v305 = vunpack.c.l.b16 %v138
    %v306 = vunpack.c.h.b16 %v138
    %v307 = vunpack.c.l.b16 %v139
    %v308 = vunpack.c.l.b16 %v140
    %v309 = vunpack.c.h.b16 %v140
    %v310 = vunpack.c.l.b16 %v141
    %v311 = vunpack.c.h.b16 %v141
    %v312 = vunpack.c.l.b16 %v142
    %v313 = vpack.c.b16 %v298, %v293
    %v314 = vpack.c.b16 %v299, %v294
    %v315 = vpack.c.b16 %v300, %v295
    %v316 = vpack.c.b16 %v301, %v296
    %v317 = vpack.c.b16 %v302, %v297
    %v318 = vpack.c.b16 %v308, %v303
    %v319 = vpack.c.b16 %v309, %v304
    %v320 = vpack.c.b16 %v310, %v305
    %v321 = vpack.c.b16 %v311, %v306
    %v322 = vpack.c.b16 %v312, %v307
    %v334 = vsel %vm207, %v127, 0
    %336 = vmatpush.bf16.msra.mxu0 0
    %337 = vmatpush.bf16.msra.mxu0 0
    %338 = vmatpush.bf16.msra.mxu0 0
    %339 = vmatpush.bf16.msra.mxu0 0
    %340 = vmatpush.bf16.msra.mxu0 0
    %341 = vmatpush.bf16.msra.mxu0 0
    %342 = vmatpush.bf16.msra.mxu0 %v318
    %343 = vmatpush.bf16.msra.mxu0 %v313
    %344 = vmatmul.bf16.gmra.mxu0 %v334
    %v345 = vpop.f32.mrf.mxu0
    %v346 = vadd.f32 %v221, %v345
    %v347 = vpop.f32.mrf.mxu0
    %v348 = vadd.f32 %v223, %v347
    %349 = vdwg.mxu0
    %350 = vmatpush.bf16.msra.mxu0 0
    %351 = vmatpush.bf16.msra.mxu0 0
    %352 = vmatpush.bf16.msra.mxu0 0
    %353 = vmatpush.bf16.msra.mxu0 0
    %354 = vmatpush.bf16.msra.mxu0 0
    %355 = vmatpush.bf16.msra.mxu0 0
    %356 = vmatpush.bf16.msra.mxu0 %v319
    %357 = vmatpush.bf16.msra.mxu0 %v314
    %358 = vmatmul.bf16.gmra.mxu0 %v334
    %v359 = vpop.f32.mrf.mxu0
    %v360 = vadd.f32 %v235, %v359
    %v361 = vpop.f32.mrf.mxu0
    %v362 = vadd.f32 %v237, %v361
    %363 = vdwg.mxu0
    %364 = vmatpush.bf16.msra.mxu0 0
    %365 = vmatpush.bf16.msra.mxu0 0
    %366 = vmatpush.bf16.msra.mxu0 0
    %367 = vmatpush.bf16.msra.mxu0 0
    %368 = vmatpush.bf16.msra.mxu0 0
    %369 = vmatpush.bf16.msra.mxu0 0
    %370 = vmatpush.bf16.msra.mxu0 %v320
    %371 = vmatpush.bf16.msra.mxu0 %v315
    %372 = vmatmul.bf16.gmra.mxu0 %v334
    %v373 = vpop.f32.mrf.mxu0
    %v374 = vadd.f32 %v249, %v373
    %v375 = vpop.f32.mrf.mxu0
    %v376 = vadd.f32 %v251, %v375
    %377 = vdwg.mxu0
    %378 = vmatpush.bf16.msra.mxu0 0
    %379 = vmatpush.bf16.msra.mxu0 0
    %380 = vmatpush.bf16.msra.mxu0 0
    %381 = vmatpush.bf16.msra.mxu0 0
    %382 = vmatpush.bf16.msra.mxu0 0
    %383 = vmatpush.bf16.msra.mxu0 0
    %384 = vmatpush.bf16.msra.mxu0 %v321
    %385 = vmatpush.bf16.msra.mxu0 %v316
    %386 = vmatmul.bf16.gmra.mxu0 %v334
    %v387 = vpop.f32.mrf.mxu0
    %v388 = vadd.f32 %v263, %v387
    %v389 = vpop.f32.mrf.mxu0
    %v390 = vadd.f32 %v265, %v389
    %391 = vdwg.mxu0
    %392 = vmatpush.bf16.msra.mxu0 0
    %393 = vmatpush.bf16.msra.mxu0 0
    %394 = vmatpush.bf16.msra.mxu0 0
    %395 = vmatpush.bf16.msra.mxu0 0
    %396 = vmatpush.bf16.msra.mxu0 0
    %397 = vmatpush.bf16.msra.mxu0 0
    %398 = vmatpush.bf16.msra.mxu0 %v322
    %399 = vmatpush.bf16.msra.mxu0 %v317
    %400 = vmatmul.bf16.gmra.mxu0 %v334
    %v401 = vpop.f32.mrf.mxu0
    %v402 = vadd.f32 %v277, %v401
    %v403 = vpop.f32.mrf.mxu0
    %v404 = vadd.f32 %v279, %v403
    %405 = vdwg.mxu0
    %v406 = vld [vmem:[%s6] sm:$0x1f]
    %v408 = vperm.slane %v406, 0
    %v409 = vperm.slane %v406, 1
    %v410 = vperm.slane %v406, 2
    %v411 = vperm.slane %v406, 3
    %v412 = vperm.slane %v406, 4
    %v418 = vadd.f32 %v346, %v408
    %v419 = vadd.f32 %v360, %v409
    %v420 = vadd.f32 %v374, %v410
    %v421 = vadd.f32 %v388, %v411
    %v422 = vadd.f32 %v402, %v412
    %v423 = vadd.f32 %v348, %v408
    %v424 = vadd.f32 %v362, %v409
    %v425 = vadd.f32 %v376, %v410
    %v426 = vadd.f32 %v390, %v411
    %v427 = vadd.f32 %v404, %v412
    %v428 = vld [vmem:[#allocation7] sm:$0xff]
    %v429 = vld [vmem:[#allocation7 + $0x8] sm:$0xff]
    %v430 = vld [vmem:[#allocation8] sm:$0xff]
    %v431 = vld [vmem:[#allocation8 + $0x8] sm:$0xff]
    %v432 = vadd.f32 %v419, 1.0
    %v433 = vadd.f32 %v424, 1.0
    %v434 = vxor.u32 %v432, 2147483648
    %v435 = vxor.u32 %v433, 2147483648
    %v436 = vmul.f32 %v434, 1.442695
    %v437 = vpow.pop %v436
    %v438 = vmul.f32 %v435, 1.442695
    %v439 = vpow.pop %v438
    %v440 = vadd.f32 %v437, 1.0
    %v441 = vadd.f32 %v439, 1.0
    %v442 = vrcp.pop %v440
    %v443 = vmul.f32 %v440, %v442
    %v444 = vsub.f32 1.0, %v443
    %v445 = vmul.f32 %v442, %v444
    %v446 = vadd.f32 %v442, %v445
    %vm447 = vweird.f32 %v440
    %vm448 = vweird.f32 %v442
    %vm449 = vmor %vm447, %vm448
    %v450 = vsel %vm449, %v442, %v446
    %v451 = vand.u32 2147483647, %v440
    %vm452 = vcmp.eq.f32.partialorder %v451, 8.507059e+37
    %v453 = vand.u32 %v440, 2147483648
    %v454 = vor.u32 1.1754944e-38, %v453
    %v455 = vsel %vm452, %v454, %v450
    %v456 = vmul.f32 1.0, %v455
    %v457 = vrcp.pop %v441
    %v458 = vmul.f32 %v441, %v457
    %v459 = vsub.f32 1.0, %v458
    %v460 = vmul.f32 %v457, %v459
    %v461 = vadd.f32 %v457, %v460
    %vm462 = vweird.f32 %v441
    %vm463 = vweird.f32 %v457
    %vm464 = vmor %vm462, %vm463
    %v465 = vsel %vm464, %v457, %v461
    %v466 = vand.u32 2147483647, %v441
    %vm467 = vcmp.eq.f32.partialorder %v466, 8.507059e+37
    %v468 = vand.u32 %v441, 2147483648
    %v469 = vor.u32 1.1754944e-38, %v468
    %v470 = vsel %vm467, %v469, %v465
    %v471 = vmul.f32 1.0, %v470
    %v472 = vmul.f32 %v428, %v456
    %v473 = vmul.f32 %v429, %v471
    %v474 = vadd.f32 %v420, 1.0
    %v475 = vadd.f32 %v425, 1.0
    %v476 = vxor.u32 %v474, 2147483648
    %v477 = vxor.u32 %v475, 2147483648
    %v478 = vmul.f32 %v476, 1.442695
    %v479 = vpow.pop %v478
    %v480 = vmul.f32 %v477, 1.442695
    %v481 = vpow.pop %v480
    %v482 = vadd.f32 %v479, 1.0
    %v483 = vadd.f32 %v481, 1.0
    %v484 = vrcp.pop %v482
    %v485 = vmul.f32 %v482, %v484
    %v486 = vsub.f32 1.0, %v485
    %v487 = vmul.f32 %v484, %v486
    %v488 = vadd.f32 %v484, %v487
    %vm489 = vweird.f32 %v482
    %vm490 = vweird.f32 %v484
    %vm491 = vmor %vm489, %vm490
    %v492 = vsel %vm491, %v484, %v488
    %v493 = vand.u32 2147483647, %v482
    %vm494 = vcmp.eq.f32.partialorder %v493, 8.507059e+37
    %v495 = vand.u32 %v482, 2147483648
    %v496 = vor.u32 1.1754944e-38, %v495
    %v497 = vsel %vm494, %v496, %v492
    %v498 = vmul.f32 1.0, %v497
    %v499 = vrcp.pop %v483
    %v500 = vmul.f32 %v483, %v499
    %v501 = vsub.f32 1.0, %v500
    %v502 = vmul.f32 %v499, %v501
    %v503 = vadd.f32 %v499, %v502
    %vm504 = vweird.f32 %v483
    %vm505 = vweird.f32 %v499
    %vm506 = vmor %vm504, %vm505
    %v507 = vsel %vm506, %v499, %v503
    %v508 = vand.u32 2147483647, %v483
    %vm509 = vcmp.eq.f32.partialorder %v508, 8.507059e+37
    %v510 = vand.u32 %v483, 2147483648
    %v511 = vor.u32 1.1754944e-38, %v510
    %v512 = vsel %vm509, %v511, %v507
    %v513 = vmul.f32 1.0, %v512
    %v514 = vmul.f32 %v430, %v498
    %v515 = vmul.f32 %v431, %v513
    %v516 = vadd.f32 %v472, %v514
    %v517 = vadd.f32 %v473, %v515
    %v518 = vtanh.pop %v421
    %v519 = vtanh.pop %v426
    %v520 = vxor.u32 %v418, 2147483648
    %v521 = vxor.u32 %v423, 2147483648
    %v522 = vmul.f32 %v520, 1.442695
    %v523 = vpow.pop %v522
    %v524 = vmul.f32 %v521, 1.442695
    %v525 = vpow.pop %v524
    %v526 = vadd.f32 %v523, 1.0
    %v527 = vadd.f32 %v525, 1.0
    %v528 = vrcp.pop %v526
    %v529 = vmul.f32 %v526, %v528
    %v530 = vsub.f32 1.0, %v529
    %v531 = vmul.f32 %v528, %v530
    %v532 = vadd.f32 %v528, %v531
    %vm533 = vweird.f32 %v526
    %vm534 = vweird.f32 %v528
    %vm535 = vmor %vm533, %vm534
    %v536 = vsel %vm535, %v528, %v532
    %v537 = vand.u32 2147483647, %v526
    %vm538 = vcmp.eq.f32.partialorder %v537, 8.507059e+37
    %v539 = vand.u32 %v526, 2147483648
    %v540 = vor.u32 1.1754944e-38, %v539
    %v541 = vsel %vm538, %v540, %v536
    %v542 = vmul.f32 1.0, %v541
    %v543 = vrcp.pop %v527
    %v544 = vmul.f32 %v527, %v543
    %v545 = vsub.f32 1.0, %v544
    %v546 = vmul.f32 %v543, %v545
    %v547 = vadd.f32 %v543, %v546
    %vm548 = vweird.f32 %v527
    %vm549 = vweird.f32 %v543
    %vm550 = vmor %vm548, %vm549
    %v551 = vsel %vm550, %v543, %v547
    %v552 = vand.u32 2147483647, %v527
    %vm553 = vcmp.eq.f32.partialorder %v552, 8.507059e+37
    %v554 = vand.u32 %v527, 2147483648
    %v555 = vor.u32 1.1754944e-38, %v554
    %v556 = vsel %vm553, %v555, %v551
    %v557 = vmul.f32 1.0, %v556
    %v558 = vmul.f32 %v518, %v542
    %v559 = vmul.f32 %v519, %v557
    %v560 = vadd.f32 %v516, %v558
    %v561 = vadd.f32 %v517, %v559
    %v562 = vxor.u32 %v422, 2147483648
    %v563 = vxor.u32 %v427, 2147483648
    %v564 = vmul.f32 %v562, 1.442695
    %v565 = vpow.pop %v564
    %v566 = vmul.f32 %v563, 1.442695
    %v567 = vpow.pop %v566
    %v568 = vadd.f32 %v565, 1.0
    %v569 = vadd.f32 %v567, 1.0
    %v570 = vrcp.pop %v568
    %v571 = vmul.f32 %v568, %v570
    %v572 = vsub.f32 1.0, %v571
    %v573 = vmul.f32 %v570, %v572
    %v574 = vadd.f32 %v570, %v573
    %vm575 = vweird.f32 %v568
    %vm576 = vweird.f32 %v570
    %vm577 = vmor %vm575, %vm576
    %v578 = vsel %vm577, %v570, %v574
    %v579 = vand.u32 2147483647, %v568
    %vm580 = vcmp.eq.f32.partialorder %v579, 8.507059e+37
    %v581 = vand.u32 %v568, 2147483648
    %v582 = vor.u32 1.1754944e-38, %v581
    %v583 = vsel %vm580, %v582, %v578
    %v584 = vmul.f32 1.0, %v583
    %v585 = vrcp.pop %v569
    %v586 = vmul.f32 %v569, %v585
    %v587 = vsub.f32 1.0, %v586
    %v588 = vmul.f32 %v585, %v587
    %v589 = vadd.f32 %v585, %v588
    %vm590 = vweird.f32 %v569
    %vm591 = vweird.f32 %v585
    %vm592 = vmor %vm590, %vm591
    %v593 = vsel %vm592, %v585, %v589
    %v594 = vand.u32 2147483647, %v569
    %vm595 = vcmp.eq.f32.partialorder %v594, 8.507059e+37
    %v596 = vand.u32 %v569, 2147483648
    %v597 = vor.u32 1.1754944e-38, %v596
    %v598 = vsel %vm595, %v597, %v593
    %v599 = vmul.f32 1.0, %v598
    %v600 = vtanh.pop %v560
    %v601 = vtanh.pop %v561
    %v602 = vmul.f32 %v584, %v600
    %v603 = vmul.f32 %v599, %v601
    %604 = vst [vmem:[#allocation13] sm:$0xff] %v602
    %605 = vst [vmem:[#allocation13 + $0x8] sm:$0xff] %v603
    %606 = vst [vmem:[#allocation14] sm:$0xff] %v560
    %607 = vst [vmem:[#allocation14 + $0x8] sm:$0xff] %v561
    // Predicated region
    $region54: #{tpu_custom_call.1} parent=1 // pred_check
      _
    $region55: #{tpu_custom_call.1} parent=1 // pred_check_branch
      %609 = sbr.rel (0) target = $region57
    $region56: #{tpu_custom_call.1} parent=1 // pred_region
      %611 = vsyncadd [#allocation4], 0
      %s612 = sshll.u32 [#allocation13], 4
      %s613 = int_to_ptr.vmem [resolvable:$true] %s612
      %s614 = sshll.u32 %s7, 4
      %s615 = int_to_ptr.hbm [resolvable:$true] %s614
      %620 = dma.vmem_to_hbm [thread:$0]  %s613, 256, %s615, [#allocation4], 128, 128, 8
    $region57: #{tpu_custom_call.1} parent=1 // pred_fallthru
      _
    // Predicated region
    $region58: #{tpu_custom_call.1} parent=1 // pred_check
      _
    $region59: #{tpu_custom_call.1} parent=1 // pred_check_branch
      %622 = sbr.rel (0) target = $region61
    $region60: #{tpu_custom_call.1} parent=1 // pred_region
      %624 = vsyncadd [#allocation15], 0
      %s625 = sshll.u32 [#allocation14], 4
      %s626 = int_to_ptr.vmem [resolvable:$true] %s625
      %s627 = sshll.u32 %s8, 4
      %s628 = int_to_ptr.hbm [resolvable:$true] %s627
      %633 = dma.vmem_to_hbm [thread:$0]  %s626, 256, %s628, [#allocation15], 128, 128, 8
    $region61: #{tpu_custom_call.1} parent=1 // pred_fallthru
      _
    // Predicated region
    $region62: #{tpu_custom_call.1} parent=1 // pred_check
      _
    $region63: #{tpu_custom_call.1} parent=1 // pred_check_branch
      %635 = sbr.rel (0) target = $region65
    $region64: #{tpu_custom_call.1} parent=1 // pred_region
      %637 = dma.done [#allocation4], 256
    $region65: #{tpu_custom_call.1} parent=1 // pred_fallthru
      _
    // Predicated region
    $region66: #{tpu_custom_call.1} parent=1 // pred_check
      _
    $region67: #{tpu_custom_call.1} parent=1 // pred_check_branch
      %639 = sbr.rel (0) target = $region69
    $region68: #{tpu_custom_call.1} parent=1 // pred_region
      %641 = dma.done [#allocation15], 256
    $region69: #{tpu_custom_call.1} parent=1 // pred_fallthru
      _
    %642 = vsyncpa [#allocation3], 1
    %643 = vsyncpa [#allocation6], 1
    %644 = vsyncpa [#allocation9], 1
    %645 = vsyncpa [#allocation12], 1
    %646 = vsyncpa [#allocation4], 1
    %647 = vsyncpa [#allocation15], 1

</llo_original>
